<compile_context>
chip_gen: v6e
topology: v6e:2x2x1
jax: 0.10.0
libtpu: 0.0.40
codegen_flags: <defaults>
</compile_context>

<pallas_src>
import functools

import jax
import jax.numpy as jnp
from jax.experimental import pallas as pl
from jax.experimental.pallas import tpu as pltpu

_LANE = 128          # vreg lane width
_I8_SUBLANE = 32     # int8 native sublane tile


def _roi_level_kernel(rois_ref, lvl_ref, cnt_ref, *, levels_num,
                      canonical_level, canonical_scale, n_valid, block_rows):
    """One grid step: (4, R, 128) f32 rois -> (R, 128) i8 levels + counts."""
    # Sublane-dense slabs: each coordinate is a full (R, 128) tile.
    x1 = rois_ref[0]
    y1 = rois_ref[1]
    x2 = rois_ref[2]
    y2 = rois_ref[3]

    areas = (x2 - x1 + 1.0) * (y2 - y1 + 1.0)                       # (R, 128)
    # Keep the explicit divide (matches the PyTorch reference rounding better
    # than a reciprocal multiply; it is fully hidden under HBM anyway).
    scaled = jnp.sqrt(areas) / jnp.float32(canonical_scale) + jnp.float32(1e-6)
    target = jnp.floor(jnp.log2(scaled) + jnp.float32(canonical_level))
    target = jnp.clip(target, 0.0, jnp.float32(levels_num - 1))
    lvl = target.astype(jnp.int32)

    # int8 writeback: 4x less output HBM traffic (levels_num << 127).
    lvl_ref[...] = lvl.astype(jnp.int8)

    # Per-block, per-level, per-lane partial counts (free filler while
    # HBM-bound).  Padded tail entries (global index >= n_valid) are mapped to
    # level -1 so they never contribute to any level's count.
    r_iota = jax.lax.broadcasted_iota(jnp.int32, (block_rows, _LANE), 0)
    l_iota = jax.lax.broadcasted_iota(jnp.int32, (block_rows, _LANE), 1)
    gidx = pl.program_id(0) * (block_rows * _LANE) + r_iota * _LANE + l_iota
    lvl_masked = jnp.where(gidx < n_valid, lvl, -1)
    parts = [
        jnp.sum((lvl_masked == i).astype(jnp.int32), axis=0, keepdims=True)
        for i in range(levels_num)
    ]
    cnt_ref[0] = jnp.concatenate(parts, axis=0)                     # (L, 128)


def _choose_blocking(n, max_block_rows=512):
    """Pick (rows_pad, block_rows), in units of 128-ROI sublane rows."""
    rows = pl.cdiv(max(n, 1), _LANE)
    # Multiple of 32 so the packed int8 output tiles cleanly.
    rows = pl.cdiv(rows, _I8_SUBLANE) * _I8_SUBLANE
    if rows <= max_block_rows:
        if rows >= 2 * _I8_SUBLANE and rows % (2 * _I8_SUBLANE) == 0:
            # Two grid steps so ("parallel",) can shard across both v7x
            # TensorCores; costs at most one extra ~0.35us step elsewhere.
            block_rows = rows // 2
        else:
            block_rows = rows
    else:
        # Large N: big fixed blocks (512 rows = 64K ROIs, ~1 MiB f32 input per
        # step) -> DMA pipeline near HBM roofline, safely within VMEM limits on
        # v5e/v6e/v7x even double-buffered.
        block_rows = max_block_rows
        rows = pl.cdiv(rows, block_rows) * block_rows
    return rows, block_rows


def compute_target_levels_and_counts(rois, *, levels_num, canonical_level=2,
                                     canonical_scale=224, max_block_rows=512):
    """(N, 4) f32 rois -> ((N,) i32 target levels, (levels_num,) i32 counts)."""
    n = int(rois.shape[0])
    rows, block_rows = _choose_blocking(n, max_block_rows)
    n_pad = rows * _LANE
    grid = rows // block_rows

    # Lane/sublane-dense layout (4, rows, 128): coordinate c of ROI j lives at
    # [c, j // 128, j % 128].  pad -> transpose -> reshape are adjacent so XLA
    # fuses them into a single copy pass.
    # TODO(synk): have the upstream proposal producer emit this (4, rows, 128)
    # layout directly to remove this extra HBM pass entirely.
    rois_f = rois.astype(jnp.float32)
    rois_t = jnp.pad(rois_f, ((0, n_pad - n), (0, 0))).T.reshape(4, rows, _LANE)

    kernel = functools.partial(
        _roi_level_kernel,
        levels_num=levels_num,
        canonical_level=canonical_level,
        canonical_scale=canonical_scale,
        n_valid=n,
        block_rows=block_rows,
    )

    lvl, cnt = pl.pallas_call(
        kernel,
        out_shape=(
            jax.ShapeDtypeStruct((rows, _LANE), jnp.int8),
            jax.ShapeDtypeStruct((grid, levels_num, _LANE), jnp.int32),
        ),
        grid=(grid,),
        in_specs=[pl.BlockSpec((4, block_rows, _LANE), lambda i: (0, i, 0))],
        out_specs=(
            pl.BlockSpec((block_rows, _LANE), lambda i: (i, 0)),
            pl.BlockSpec((1, levels_num, _LANE), lambda i: (i, 0, 0)),
        ),
        compiler_params=pltpu.CompilerParams(
            dimension_semantics=("parallel",)),
    )(rois_t)

    levels = lvl.reshape(-1)[:n].astype(jnp.int32)
    counts = jnp.sum(cnt, axis=(0, 2)).astype(jnp.int32)
    return levels, counts


class ROIsDistributor:
    """JAX/Pallas port of segmentoly's ROIsDistributor."""

    def __init__(self, levels_num, canonical_level=2, canonical_scale=224):
        self.levels_num = levels_num
        self.canonical_level = canonical_level
        self.canonical_scale = canonical_scale

    def __call__(self, rois, scores=None):
        n = rois.shape[0]
        levels, counts = compute_target_levels_and_counts(
            rois,
            levels_num=self.levels_num,
            canonical_level=self.canonical_level,
            canonical_scale=self.canonical_scale,
        )

        # TODO(synk): torch `nonzero()` yields variable-length outputs; with
        # static shapes each level's index list is padded to length N with -1
        # and the valid count per level is returned alongside.
        starts = jnp.concatenate(
            [jnp.zeros((1,), jnp.int32),
             jnp.cumsum(counts)[:-1].astype(jnp.int32)])
        order = jnp.argsort(levels, stable=True).astype(jnp.int32)
        pos = jnp.arange(n, dtype=jnp.int32)

        level_indices = []
        for i in range(self.levels_num):
            gathered = jnp.take(order, starts[i] + pos, mode="clip")
            idx = jnp.where(pos < counts[i], gathered, -1).astype(jnp.int32)
            level_indices.append(idx)
        level_counts = tuple(counts[i] for i in range(self.levels_num))
        return tuple(level_indices), level_counts, levels


def _reference_level_values(rois, canonical_level, canonical_scale):
    import numpy as np
    rois = np.asarray(rois, dtype=np.float32)
    areas = (rois[:, 2] - rois[:, 0] + 1.0) * (rois[:, 3] - rois[:, 1] + 1.0)
    return np.log2(np.sqrt(areas) / canonical_scale + 1e-6) + canonical_level


if __name__ == "__main__":
    import numpy as np

    levels_num = 4
    canonical_level = 2
    canonical_scale = 224
    distributor = ROIsDistributor(levels_num, canonical_level, canonical_scale)

    key = jax.random.PRNGKey(0)
    for case, n_rois in enumerate((16, 4100)):
        k1, k2, k3, key = jax.random.split(key, 4)
        # Deterministic synthetic ROIs [x1, y1, x2, y2] with a wide range of
        # box sizes so several FPN levels are populated.
        xy1 = jax.random.uniform(k1, (n_rois, 2), minval=0.0, maxval=100.0)
        wh = jax.random.uniform(k2, (n_rois, 2), minval=4.0, maxval=400.0)
        rois = jnp.concatenate([xy1, xy1 + wh], axis=1).astype(jnp.float32)
        scores = jax.random.uniform(k3, (n_rois,), dtype=jnp.float32)  # unused

        level_indices, level_counts, levels = distributor(rois, scores)
        levels = jax.block_until_ready(levels)
        level_indices = [jax.block_until_ready(li) for li in level_indices]
        got_levels = np.asarray(levels)

        # Reference check. TPU EUP sqrt/log2 are approximate, so only require
        # exact equality for boxes whose reference value is safely away from a
        # floor() level boundary; boundary boxes may differ by at most 1.
        v = _reference_level_values(np.asarray(rois), canonical_level,
                                    canonical_scale)
        ref_levels = np.clip(np.floor(v), 0, levels_num - 1).astype(np.int32)
        near_boundary = np.abs(v - np.round(v)) < 1e-4
        assert np.array_equal(got_levels[~near_boundary],
                              ref_levels[~near_boundary]), case
        assert np.all(np.abs(got_levels - ref_levels) <= 1), case

        # Self-consistency: index lists / counts must partition arange(n) by
        # the kernel's own level assignment, in ascending original order
        # (matching torch `nonzero()` ordering).
        for i in range(levels_num):
            want = np.nonzero(got_levels == i)[0]
            got_idx = np.asarray(level_indices[i])
            got_cnt = int(level_counts[i])
            assert got_cnt == want.shape[0], (case, i)
            assert np.array_equal(got_idx[:got_cnt], want), (case, i)
            assert np.all(got_idx[got_cnt:] == -1), (case, i)

    print("KERNEL_OK")
</pallas_src>

<mosaic_0001>
module attributes {stable_mosaic.version = 11 : i64} {
  func.func @_roi_level_kernel(%arg0: i32, %arg1: memref<4x32x128xf32, #tpu.memory_space<vmem>>, %arg2: memref<32x128xi8, #tpu.memory_space<vmem>>, %arg3: memref<1x4x128xi32, #tpu.memory_space<vmem>>) attributes {dimension_semantics = [#tpu.dimension_semantics<parallel>], iteration_bounds = array<i64: 1>, scalar_prefetch = 0 : i64, scratch_operands = 0 : i64, tpu.core_type = #tpu.core_type<tc>, window_params = [{transform_indices = @transform_0, window_bounds = array<i64: 4, 32, 128>}, {transform_indices = @transform_1, window_bounds = array<i64: 32, 128>}, {transform_indices = @transform_2, window_bounds = array<i64: 1, 4, 128>}]} {
    %c0 = arith.constant 0 : index
    %c0_0 = arith.constant 0 : index
    %c0_1 = arith.constant 0 : index
    %0 = vector.load %arg1[%c0, %c0_0, %c0_1] : memref<4x32x128xf32, #tpu.memory_space<vmem>>, vector<1x32x128xf32>
    %1 = vector.shape_cast %0 : vector<1x32x128xf32> to vector<32x128xf32>
    %c1 = arith.constant 1 : index
    %c0_2 = arith.constant 0 : index
    %c0_3 = arith.constant 0 : index
    %2 = vector.load %arg1[%c1, %c0_2, %c0_3] : memref<4x32x128xf32, #tpu.memory_space<vmem>>, vector<1x32x128xf32>
    %3 = vector.shape_cast %2 : vector<1x32x128xf32> to vector<32x128xf32>
    %c2 = arith.constant 2 : index
    %c0_4 = arith.constant 0 : index
    %c0_5 = arith.constant 0 : index
    %4 = vector.load %arg1[%c2, %c0_4, %c0_5] : memref<4x32x128xf32, #tpu.memory_space<vmem>>, vector<1x32x128xf32>
    %5 = vector.shape_cast %4 : vector<1x32x128xf32> to vector<32x128xf32>
    %c3 = arith.constant 3 : index
    %c0_6 = arith.constant 0 : index
    %c0_7 = arith.constant 0 : index
    %6 = vector.load %arg1[%c3, %c0_6, %c0_7] : memref<4x32x128xf32, #tpu.memory_space<vmem>>, vector<1x32x128xf32>
    %7 = vector.shape_cast %6 : vector<1x32x128xf32> to vector<32x128xf32>
    %8 = arith.subf %5, %1 : vector<32x128xf32>
    %cst = arith.constant 1.000000e+00 : f32
    %9 = vector.broadcast %cst : f32 to vector<32x128xf32>
    %10 = arith.addf %8, %9 : vector<32x128xf32>
    %11 = arith.subf %7, %3 : vector<32x128xf32>
    %cst_8 = arith.constant 1.000000e+00 : f32
    %12 = vector.broadcast %cst_8 : f32 to vector<32x128xf32>
    %13 = arith.addf %11, %12 : vector<32x128xf32>
    %14 = arith.mulf %10, %13 : vector<32x128xf32>
    %15 = math.sqrt %14 : vector<32x128xf32>
    %cst_9 = arith.constant 2.240000e+02 : f32
    %16 = vector.broadcast %cst_9 : f32 to vector<32x128xf32>
    %17 = arith.divf %15, %16 : vector<32x128xf32>
    %cst_10 = arith.constant 9.99999997E-7 : f32
    %18 = vector.broadcast %cst_10 : f32 to vector<32x128xf32>
    %19 = arith.addf %17, %18 : vector<32x128xf32>
    %20 = math.log %19 : vector<32x128xf32>
    %cst_11 = arith.constant 2.000000e+00 : f32
    %21 = math.log %cst_11 : f32
    %22 = vector.broadcast %21 : f32 to vector<32x128xf32>
    %23 = arith.divf %20, %22 : vector<32x128xf32>
    %cst_12 = arith.constant 2.000000e+00 : f32
    %24 = vector.broadcast %cst_12 : f32 to vector<32x128xf32>
    %25 = arith.addf %23, %24 : vector<32x128xf32>
    %26 = math.floor %25 : vector<32x128xf32>
    %cst_13 = arith.constant 0.000000e+00 : f32
    %cst_14 = arith.constant 3.000000e+00 : f32
    %27 = vector.broadcast %cst_13 : f32 to vector<32x128xf32>
    %28 = arith.maximumf %27, %26 : vector<32x128xf32>
    %29 = vector.broadcast %cst_14 : f32 to vector<32x128xf32>
    %30 = arith.minimumf %29, %28 : vector<32x128xf32>
    %31 = arith.fptosi %30 : vector<32x128xf32> to vector<32x128xi32>
    %32 = arith.trunci %31 : vector<32x128xi32> to vector<32x128xi8>
    %c0_15 = arith.constant 0 : index
    %c0_16 = arith.constant 0 : index
    %33 = vector.load %arg2[%c0_15, %c0_16] : memref<32x128xi8, #tpu.memory_space<vmem>>, vector<32x128xi8>
    tpu.vector_store %arg2[%c0_15, %c0_16], %32 {strides = array<i32>} : memref<32x128xi8, #tpu.memory_space<vmem>>, vector<32x128xi8>,
    %34 = tpu.iota {dimensions = array<i32: 0>} : vector<32x128xi32>
    %35 = tpu.iota {dimensions = array<i32: 1>} : vector<32x128xi32>
    %c4096_i32 = arith.constant 4096 : i32
    %36 = arith.muli %arg0, %c4096_i32 : i32
    %c128_i32 = arith.constant 128 : i32
    %37 = vector.broadcast %c128_i32 : i32 to vector<32x128xi32>
    %38 = arith.muli %34, %37 : vector<32x128xi32>
    %39 = vector.broadcast %36 : i32 to vector<32x128xi32>
    %40 = arith.addi %39, %38 : vector<32x128xi32>
    %41 = arith.addi %40, %35 : vector<32x128xi32>
    %c16_i32 = arith.constant 16 : i32
    %42 = vector.broadcast %c16_i32 : i32 to vector<32x128xi32>
    %43 = arith.cmpi slt, %41, %42 : vector<32x128xi32>
    %c-1_i32 = arith.constant -1 : i32
    %44 = vector.broadcast %c-1_i32 : i32 to vector<32x128xi32>
    %45 = arith.select %43, %31, %44 : vector<32x128xi1>, vector<32x128xi32>
    %c0_i32 = arith.constant 0 : i32
    %46 = vector.broadcast %c0_i32 : i32 to vector<32x128xi32>
    %47 = arith.cmpi eq, %45, %46 : vector<32x128xi32>
    %48 = arith.extui %47 : vector<32x128xi1> to vector<32x128xi32>
    %cst_17 = arith.constant dense<0> : vector<128xi32>
    %49 = vector.multi_reduction <add>, %48, %cst_17 [0] : vector<32x128xi32> to vector<128xi32>
    %50 = vector.shape_cast %49 : vector<128xi32> to vector<1x128xi32>
    %c1_i32 = arith.constant 1 : i32
    %51 = vector.broadcast %c1_i32 : i32 to vector<32x128xi32>
    %52 = arith.cmpi eq, %45, %51 : vector<32x128xi32>
    %53 = arith.extui %52 : vector<32x128xi1> to vector<32x128xi32>
    %cst_18 = arith.constant dense<0> : vector<128xi32>
    %54 = vector.multi_reduction <add>, %53, %cst_18 [0] : vector<32x128xi32> to vector<128xi32>
    %55 = vector.shape_cast %54 : vector<128xi32> to vector<1x128xi32>
    %c2_i32 = arith.constant 2 : i32
    %56 = vector.broadcast %c2_i32 : i32 to vector<32x128xi32>
    %57 = arith.cmpi eq, %45, %56 : vector<32x128xi32>
    %58 = arith.extui %57 : vector<32x128xi1> to vector<32x128xi32>
    %cst_19 = arith.constant dense<0> : vector<128xi32>
    %59 = vector.multi_reduction <add>, %58, %cst_19 [0] : vector<32x128xi32> to vector<128xi32>
    %60 = vector.shape_cast %59 : vector<128xi32> to vector<1x128xi32>
    %c3_i32 = arith.constant 3 : i32
    %61 = vector.broadcast %c3_i32 : i32 to vector<32x128xi32>
    %62 = arith.cmpi eq, %45, %61 : vector<32x128xi32>
    %63 = arith.extui %62 : vector<32x128xi1> to vector<32x128xi32>
    %cst_20 = arith.constant dense<0> : vector<128xi32>
    %64 = vector.multi_reduction <add>, %63, %cst_20 [0] : vector<32x128xi32> to vector<128xi32>
    %65 = vector.shape_cast %64 : vector<128xi32> to vector<1x128xi32>
    %66 = tpu.concatenate %50, %55, %60, %65 in 0 : vector<1x128xi32>, vector<1x128xi32>, vector<1x128xi32>, vector<1x128xi32> -> vector<4x128xi32>
    %c0_21 = arith.constant 0 : index
    %c0_22 = arith.constant 0 : index
    %c0_23 = arith.constant 0 : index
    %67 = vector.load %arg3[%c0_21, %c0_22, %c0_23] : memref<1x4x128xi32, #tpu.memory_space<vmem>>, vector<1x4x128xi32>
    %68 = vector.shape_cast %67 : vector<1x4x128xi32> to vector<4x128xi32>
    %69 = vector.shape_cast %66 : vector<4x128xi32> to vector<1x4x128xi32>
    tpu.vector_store %arg3[%c0_21, %c0_22, %c0_23], %69 {strides = array<i32>} : memref<1x4x128xi32, #tpu.memory_space<vmem>>, vector<1x4x128xi32>,
    return
  }
  func.func @transform_0(%arg0: i32) -> (i32, i32, i32) {
    %c0_i32 = arith.constant 0 : i32
    %c0_i32_0 = arith.constant 0 : i32
    %c0_i32_1 = arith.constant 0 : i32
    return %c0_i32, %arg0, %c0_i32_0 : i32, i32, i32
  }
  func.func @transform_1(%arg0: i32) -> (i32, i32) {
    %c0_i32 = arith.constant 0 : i32
    %c0_i32_0 = arith.constant 0 : i32
    return %arg0, %c0_i32 : i32, i32
  }
  func.func @transform_2(%arg0: i32) -> (i32, i32, i32) {
    %c0_i32 = arith.constant 0 : i32
    %c0_i32_0 = arith.constant 0 : i32
    %c0_i32_1 = arith.constant 0 : i32
    return %arg0, %c0_i32, %c0_i32_0 : i32, i32, i32
  }
}

</mosaic_0001>

<llo_original>
// kernel: tpu_custom_call.1
$region0: #{tpu_custom_call.1}
  #allocation0 [shape = 'u32[]', space=smem, size = 0x4, offset = 0x4, fixed_abs, tag = 'smem constant byte address 0x4 - core index']
  #allocation1 [shape = 'u32[144,128]{1,0:T(1,128)}', space=vmem, size = 0x12000, scoped, tag = 'internal scratch']
  %s0 = inlined_call_operand.hbm [shape: f32[4,32,128], index: 0, kind: input, shape index: {}]
  %s1 = inlined_call_operand.hbm [shape: s8[32,128], index: 1, kind: output, shape index: {0}]
  %s2 = inlined_call_operand.hbm [shape: s32[1,4,128], index: 2, kind: output, shape index: {1}]
  %3 = xla_tuple %s1, %s2
  %s4 = sld [smem:[#allocation0]]
  $region26: #{tpu_custom_call.1} parent=0
    _
  %s6 = ssub.s32 1, %s4
  %s7 = scalar_select 0, %s6, %s4
  $region1: #{tpu_custom_call.1} parent=0
    #allocation2 [shape = 'u8[65536]{0}', space=vmem, size = 0x10000, scoped, tag = 'input window, operand 0, single buffered']
    #allocation3 [shape = 's32[1]{0}', space=sflag, size = 0x4, scoped, tag = 'scoped memory for tpu_custom_call.1']
    #allocation4 [shape = 's32[1]{0}', space=sflag, size = 0x4, scoped, tag = 'scoped memory for tpu_custom_call.1']
    #allocation5 [shape = 'u8[4096]{0}', space=vmem, size = 0x1000, scoped, tag = 'output window, operand 0, single buffered']
    #allocation6 [shape = 'u8[2048]{0}', space=vmem, size = 0x800, scoped, tag = 'output window, operand 1, single buffered']
    #allocation7 [shape = 's32[1]{0}', space=sflag, size = 0x4, scoped, tag = 'scoped memory for tpu_custom_call.1']
    %8 = vsyncpa [#allocation3], 0
    %9 = vsyncpa [#allocation4], 0
    %10 = vsyncpa [#allocation7], 0
    // Predicated region
    $region2: #{tpu_custom_call.1} parent=1 // pred_check
      _
    $region3: #{tpu_custom_call.1} parent=1 // pred_check_branch
      %12 = sbr.rel (0) target = $region5
    $region4: #{tpu_custom_call.1} parent=1 // pred_region
      %s14 = ssub.s32 2048, 2048
      %15 = vsyncadd [#allocation3], %s14
      %s16 = sshll.u32 [#allocation2], 4
      %s17 = int_to_ptr.vmem [resolvable:$true] %s16
      %22 = dma.hbm_to_vmem [thread:$0]  %s0, 2048, %s17, [#allocation3], 128, 128, 8
    $region5: #{tpu_custom_call.1} parent=1 // pred_fallthru
      _
    // Predicated region
    $region6: #{tpu_custom_call.1} parent=1 // pred_check
      _
    $region7: #{tpu_custom_call.1} parent=1 // pred_check_branch
      %24 = sbr.rel (0) target = $region9
    $region8: #{tpu_custom_call.1} parent=1 // pred_region
      %25 = dma.done [#allocation3], 2048
    $region9: #{tpu_custom_call.1} parent=1 // pred_fallthru
      _
    %v26 = vld [vmem:[#allocation2] sm:$0xff]
    %v27 = vld [vmem:[#allocation2 + $0x8] sm:$0xff]
    %v28 = vld [vmem:[#allocation2 + $0x10] sm:$0xff]
    %v29 = vld [vmem:[#allocation2 + $0x18] sm:$0xff]
    %s30 = scalar_lea.vmem [#allocation2], 32
    %v31 = vld [vmem:[%s30] sm:$0xff]
    %v32 = vld [vmem:[%s30 + $0x8] sm:$0xff]
    %v33 = vld [vmem:[%s30 + $0x10] sm:$0xff]
    %v34 = vld [vmem:[%s30 + $0x18] sm:$0xff]
    %s35 = scalar_lea.vmem [#allocation2], 64
    %v36 = vld [vmem:[%s35] sm:$0xff]
    %v37 = vld [vmem:[%s35 + $0x8] sm:$0xff]
    %v38 = vld [vmem:[%s35 + $0x10] sm:$0xff]
    %v39 = vld [vmem:[%s35 + $0x18] sm:$0xff]
    %s40 = scalar_lea.vmem [#allocation2], 96
    %v41 = vld [vmem:[%s40] sm:$0xff]
    %v42 = vld [vmem:[%s40 + $0x8] sm:$0xff]
    %v43 = vld [vmem:[%s40 + $0x10] sm:$0xff]
    %v44 = vld [vmem:[%s40 + $0x18] sm:$0xff]
    %v45 = vsub.f32 %v36, %v26
    %v46 = vsub.f32 %v37, %v27
    %v47 = vsub.f32 %v38, %v28
    %v48 = vsub.f32 %v39, %v29
    %v49 = vadd.f32 %v45, 1.0
    %v50 = vadd.f32 %v46, 1.0
    %v51 = vadd.f32 %v47, 1.0
    %v52 = vadd.f32 %v48, 1.0
    %v53 = vsub.f32 %v41, %v31
    %v54 = vsub.f32 %v42, %v32
    %v55 = vsub.f32 %v43, %v33
    %v56 = vsub.f32 %v44, %v34
    %v57 = vadd.f32 %v53, 1.0
    %v58 = vadd.f32 %v54, 1.0
    %v59 = vadd.f32 %v55, 1.0
    %v60 = vadd.f32 %v56, 1.0
    %v61 = vmul.f32 %v49, %v57
    %v62 = vmul.f32 %v50, %v58
    %v63 = vmul.f32 %v51, %v59
    %v64 = vmul.f32 %v52, %v60
    %v65 = vrsqrt.pop %v61
    %v66 = vmul.f32 %v61, %v65
    %vm67 = vcmp.eq.f32.partialorder %v61, inf
    %v68 = vsel %vm67, %v61, %v66
    %vm69 = vcmp.eq.f32.partialorder %v61, 0.0
    %v70 = vand.u32 %v61, 2147483648
    %v71 = vsel %vm69, %v70, %v68
    %v72 = vrsqrt.pop %v62
    %v73 = vmul.f32 %v62, %v72
    %vm74 = vcmp.eq.f32.partialorder %v62, inf
    %v75 = vsel %vm74, %v62, %v73
    %vm76 = vcmp.eq.f32.partialorder %v62, 0.0
    %v77 = vand.u32 %v62, 2147483648
    %v78 = vsel %vm76, %v77, %v75
    %v79 = vrsqrt.pop %v63
    %v80 = vmul.f32 %v63, %v79
    %vm81 = vcmp.eq.f32.partialorder %v63, inf
    %v82 = vsel %vm81, %v63, %v80
    %vm83 = vcmp.eq.f32.partialorder %v63, 0.0
    %v84 = vand.u32 %v63, 2147483648
    %v85 = vsel %vm83, %v84, %v82
    %v86 = vrsqrt.pop %v64
    %v87 = vmul.f32 %v64, %v86
    %vm88 = vcmp.eq.f32.partialorder %v64, inf
    %v89 = vsel %vm88, %v64, %v87
    %vm90 = vcmp.eq.f32.partialorder %v64, 0.0
    %v91 = vand.u32 %v64, 2147483648
    %v92 = vsel %vm90, %v91, %v89
    %v93 = vrcp.pop 224.0
    %v94 = vmul.f32 %v71, %v93
    %v95 = vmul.f32 %v78, %v93
    %v96 = vmul.f32 %v85, %v93
    %v97 = vmul.f32 %v92, %v93
    %v98 = vadd.f32 %v94, 1e-06
    %v99 = vadd.f32 %v95, 1e-06
    %v100 = vadd.f32 %v96, 1e-06
    %v101 = vadd.f32 %v97, 1e-06
    %v102 = vlog2.pop %v98
    %v103 = vmul.f32 %v102, 0.6931472
    %v104 = vlog2.pop %v99
    %v105 = vmul.f32 %v104, 0.6931472
    %v106 = vlog2.pop %v100
    %v107 = vmul.f32 %v106, 0.6931472
    %v108 = vlog2.pop %v101
    %v109 = vmul.f32 %v108, 0.6931472
    %v110 = vrcp.pop 0.6931472
    %v111 = vmul.f32 %v103, %v110
    %v112 = vmul.f32 %v105, %v110
    %v113 = vmul.f32 %v107, %v110
    %v114 = vmul.f32 %v109, %v110
    %v115 = vadd.f32 %v111, 2.0
    %v116 = vadd.f32 %v112, 2.0
    %v117 = vadd.f32 %v113, 2.0
    %v118 = vadd.f32 %v114, 2.0
    %v119 = vfloor.f32 %v115
    %v120 = vfloor.f32 %v116
    %v121 = vfloor.f32 %v117
    %v122 = vfloor.f32 %v118
    %v123 = vmax.f32 %v119, 0.0
    %v124 = vmax.f32 %v120, 0.0
    %v125 = vmax.f32 %v121, 0.0
    %v126 = vmax.f32 %v122, 0.0
    %v127 = vmin.f32 %v123, 3.0
    %v128 = vmin.f32 %v124, 3.0
    %v129 = vmin.f32 %v125, 3.0
    %v130 = vmin.f32 %v126, 3.0
    %v131 = vcvt.f32.s32.to.zero.pseudo %v127
    %v132 = vcvt.f32.s32.to.zero.pseudo %v128
    %v133 = vcvt.f32.s32.to.zero.pseudo %v129
    %v134 = vcvt.f32.s32.to.zero.pseudo %v130
    %v135 = vpack.c.b16 %v132, %v131
    %v136 = vpack.c.b16 %v134, %v133
    %v137 = vpack.c.b8 %v136, %v135
    %138 = vst [vmem:[#allocation5] sm:$0xff] %v137
    %v139 = vlaneseq
    %v140 = vshrl.u32 %v139, 7
    %v141 = vadd.s32 %v140, 8
    %v142 = vadd.s32 %v140, 16
    %v143 = vadd.s32 %v140, 24
    %v144 = vlaneseq
    %v145 = vand.u32 %v144, 127
    %s146 = smul.u32 0, 4096
    %v147 = vmul.u32 %v140, 128
    %v148 = vmul.u32 %v141, 128
    %v149 = vmul.u32 %v142, 128
    %v150 = vmul.u32 %v143, 128
    %v151 = vstv %s146
    %v152 = vadd.s32 %v151, %v147
    %v153 = vadd.s32 %v151, %v148
    %v154 = vadd.s32 %v151, %v149
    %v155 = vadd.s32 %v151, %v150
    %v156 = vadd.s32 %v152, %v145
    %v157 = vadd.s32 %v153, %v145
    %v158 = vadd.s32 %v154, %v145
    %v159 = vadd.s32 %v155, %v145
    %vm160 = vcmp.lt.s32.totalorder %v156, 16
    %vm161 = vcmp.lt.s32.totalorder %v157, 16
    %vm162 = vcmp.lt.s32.totalorder %v158, 16
    %vm163 = vcmp.lt.s32.totalorder %v159, 16
    %v164 = vsel %vm160, %v131, 4294967295
    %v165 = vsel %vm161, %v132, 4294967295
    %v166 = vsel %vm162, %v133, 4294967295
    %v167 = vsel %vm163, %v134, 4294967295
    %vm168 = vcmp.eq.s32.totalorder %v164, 0
    %vm169 = vcmp.eq.s32.totalorder %v165, 0
    %vm170 = vcmp.eq.s32.totalorder %v166, 0
    %vm171 = vcmp.eq.s32.totalorder %v167, 0
    %v172 = vsel %vm168, 1, 0
    %v173 = vsel %vm169, 1, 0
    %v174 = vsel %vm170, 1, 0
    %v175 = vsel %vm171, 1, 0
    %v176 = vadd.s32 %v172, %v173
    %v177 = vadd.s32 %v174, %v175
    %v178 = vadd.s32 %v176, %v177
    %v179 = vrot.slane %v178, 4
    %v180 = vadd.s32 %v178, %v179
    %v181 = vrot.slane %v180, 2
    %v182 = vadd.s32 %v180, %v181
    %v183 = vrot.slane %v182, 1
    %v184 = vadd.s32 %v182, %v183
    %vm185 = vcmp.eq.s32.totalorder %v164, 1
    %vm186 = vcmp.eq.s32.totalorder %v165, 1
    %vm187 = vcmp.eq.s32.totalorder %v166, 1
    %vm188 = vcmp.eq.s32.totalorder %v167, 1
    %v189 = vsel %vm185, 1, 0
    %v190 = vsel %vm186, 1, 0
    %v191 = vsel %vm187, 1, 0
    %v192 = vsel %vm188, 1, 0
    %v193 = vadd.s32 %v189, %v190
    %v194 = vadd.s32 %v191, %v192
    %v195 = vadd.s32 %v193, %v194
    %v196 = vrot.slane %v195, 4
    %v197 = vadd.s32 %v195, %v196
    %v198 = vrot.slane %v197, 2
    %v199 = vadd.s32 %v197, %v198
    %v200 = vrot.slane %v199, 1
    %v201 = vadd.s32 %v199, %v200
    %vm202 = vcmp.eq.s32.totalorder %v164, 2
    %vm203 = vcmp.eq.s32.totalorder %v165, 2
    %vm204 = vcmp.eq.s32.totalorder %v166, 2
    %vm205 = vcmp.eq.s32.totalorder %v167, 2
    %v206 = vsel %vm202, 1, 0
    %v207 = vsel %vm203, 1, 0
    %v208 = vsel %vm204, 1, 0
    %v209 = vsel %vm205, 1, 0
    %v210 = vadd.s32 %v206, %v207
    %v211 = vadd.s32 %v208, %v209
    %v212 = vadd.s32 %v210, %v211
    %v213 = vrot.slane %v212, 4
    %v214 = vadd.s32 %v212, %v213
    %v215 = vrot.slane %v214, 2
    %v216 = vadd.s32 %v214, %v215
    %v217 = vrot.slane %v216, 1
    %v218 = vadd.s32 %v216, %v217
    %vm219 = vcmp.eq.s32.totalorder %v164, 3
    %vm220 = vcmp.eq.s32.totalorder %v165, 3
    %vm221 = vcmp.eq.s32.totalorder %v166, 3
    %vm222 = vcmp.eq.s32.totalorder %v167, 3
    %v223 = vsel %vm219, 1, 0
    %v224 = vsel %vm220, 1, 0
    %v225 = vsel %vm221, 1, 0
    %v226 = vsel %vm222, 1, 0
    %v227 = vadd.s32 %v223, %v224
    %v228 = vadd.s32 %v225, %v226
    %v229 = vadd.s32 %v227, %v228
    %v230 = vrot.slane %v229, 4
    %v231 = vadd.s32 %v229, %v230
    %v232 = vrot.slane %v231, 2
    %v233 = vadd.s32 %v231, %v232
    %v234 = vrot.slane %v233, 1
    %v235 = vadd.s32 %v233, %v234
    %vm236 = vcmask 1040384
    %v237 = vsel %vm236, %v184, %v201
    %vm238 = vcmask 1041408
    %v239 = vsel %vm238, %v237, %v218
    %vm240 = vcmask 1042432
    %v241 = vsel %vm240, %v239, %v235
    %242 = vst [vmem:[#allocation6] sm:$0xf] %v241
    // Predicated region
    $region10: #{tpu_custom_call.1} parent=1 // pred_check
      _
    $region11: #{tpu_custom_call.1} parent=1 // pred_check_branch
      %244 = sbr.rel (0) target = $region13
    $region12: #{tpu_custom_call.1} parent=1 // pred_region
      %s246 = ssub.s32 128, 128
      %247 = vsyncadd [#allocation4], %s246
      %s249 = sshll.u32 [#allocation5], 4
      %s250 = int_to_ptr.vmem [resolvable:$true] %s249
      %252 = dma.vmem_to_hbm [thread:$0]  %s250, 128, %s1, [#allocation4]
    $region13: #{tpu_custom_call.1} parent=1 // pred_fallthru
      _
    // Predicated region
    $region14: #{tpu_custom_call.1} parent=1 // pred_check
      _
    $region15: #{tpu_custom_call.1} parent=1 // pred_check_branch
      %254 = sbr.rel (0) target = $region17
    $region16: #{tpu_custom_call.1} parent=1 // pred_region
      %s256 = ssub.s32 64, 64
      %257 = vsyncadd [#allocation7], %s256
      %s259 = sshll.u32 [#allocation6], 4
      %s260 = int_to_ptr.vmem [resolvable:$true] %s259
      %262 = dma.vmem_to_hbm [thread:$0]  %s260, 64, %s2, [#allocation7]
    $region17: #{tpu_custom_call.1} parent=1 // pred_fallthru
      _
    // Predicated region
    $region18: #{tpu_custom_call.1} parent=1 // pred_check
      _
    $region19: #{tpu_custom_call.1} parent=1 // pred_check_branch
      %264 = sbr.rel (0) target = $region21
    $region20: #{tpu_custom_call.1} parent=1 // pred_region
      %265 = dma.done [#allocation4], 128
    $region21: #{tpu_custom_call.1} parent=1 // pred_fallthru
      _
    // Predicated region
    $region22: #{tpu_custom_call.1} parent=1 // pred_check
      _
    $region23: #{tpu_custom_call.1} parent=1 // pred_check_branch
      %267 = sbr.rel (0) target = $region25
    $region24: #{tpu_custom_call.1} parent=1 // pred_region
      %268 = dma.done [#allocation7], 64
    $region25: #{tpu_custom_call.1} parent=1 // pred_fallthru
      _
    %269 = vsyncpa [#allocation3], 1
    %270 = vsyncpa [#allocation4], 1
    %271 = vsyncpa [#allocation7], 1

</llo_original>
